<compile_context>
chip_gen: v7x
topology: tpu7x:2x2x1
jax: 0.10.0
libtpu: 0.0.40
codegen_flags: <defaults>
</compile_context>

<pallas_src>
import jax
import jax.numpy as jnp
from jax.experimental import pallas as pl
from jax.experimental.pallas import tpu as pltpu


def _pool_matmul_kernel(x_ref, p_ref, o_ref):
    # x_ref: (TR, kh*W) rows of pooling windows; p_ref: (kh*W, Wo) pooling matrix
    # (scale 1/(kh*kw) folded in, resident in VMEM); o_ref: (TR, Wo).
    o_ref[...] = jnp.dot(
        x_ref[...], p_ref[...], preferred_element_type=jnp.float32
    ).astype(o_ref.dtype)


def _vmem_budget():
    """(input-block byte target, vmem_limit_bytes) sized per TPU generation."""
    try:
        cap = int(pltpu.get_tpu_info().vmem_capacity_bytes)
    except Exception:
        cap = 64 * 1024 * 1024  # be conservative if the query is unavailable
    if cap <= 64 * 1024 * 1024:
        # v7x-class: 64 MiB physical VMEM, 32 MiB default scoped limit.
        # 2x input + 2x P + 2x out stays well under the limit with ~6 MiB blocks.
        return 6 << 20, 32 * 1024 * 1024
    # v5e / v6e: 128 MiB physical VMEM — larger blocks pipeline better.
    return 8 << 20, 64 * 1024 * 1024


def _pick_block_rows(r, k, itemsize, sublane, target_bytes):
    """Rows per block: a multiple of the dtype's sublane tile, ~target_bytes of
    input per block (cap 2048 rows), capped so the grid has >=2 steps whenever
    the problem allows (so both v7x TensorCores get work)."""
    bytes_per_row = max(1, k * itemsize)
    tr = min(2048, target_bytes // bytes_per_row)
    tr = max(sublane, (tr // sublane) * sublane)
    r_up = -(-r // sublane) * sublane          # r rounded up to the sublane tile
    tr = min(tr, r_up)
    if r_up >= 2 * sublane:                    # guarantee >=2 grid steps
        half = max(sublane, (r_up // 2 // sublane) * sublane)
        tr = min(tr, half)
    return tr


def adaptive_avg_pool2d(x, sz):
    """AvgPool2d(kernel_size=sz, stride=sz, ceil_mode=False) on NCHW input."""
    kh, kw = int(sz[0]), int(sz[1])
    n, c, h, w = x.shape
    ho, wo = h // kh, w // kw
    wc = wo * kw  # cropped width
    need_crop = (ho * kh != h) or (wc != w)

    # Floor-mode crop hoisted out of the kernel (free view when shapes divide).
    xc = x[:, :, : ho * kh, :wc] if need_crop else x

    # Lane-dense 2D view: one row per output pixel row strip -> (N*C*Ho, kh*W).
    r = n * c * ho
    k = kh * wc
    x2 = xc.reshape(r, k)

    # Static pooling matrix (kh*W, Wo): entry = 1/(kh*kw) iff the input column
    # maps to that output column (H-window already merged into the row above).
    # Note: for very large Wo on v5e one could pre-sum the kh row strips on the
    # VPU and matmul against a (W, Wo) matrix to cut MXU FLOPs by kh; for the
    # small Wo used here the MXU time hides entirely under the DMA.
    col = (jnp.arange(k) % wc) // kw
    p = jnp.where(
        col[:, None] == jnp.arange(wo)[None, :], 1.0 / (kh * kw), 0.0
    ).astype(x.dtype)

    itemsize = jnp.dtype(x.dtype).itemsize
    sublane = max(8, 32 // itemsize)            # 8 f32 / 16 bf16 / 32 int8-fp8
    target_bytes, vmem_limit = _vmem_budget()
    tr = _pick_block_rows(r, k, itemsize, sublane, target_bytes)

    # Pad the row dim to a multiple of the tile (no giant-block fallback, no
    # divisibility constraint); padding is sliced off after the call.
    num_blocks = -(-r // tr)
    r_pad = num_blocks * tr
    if r_pad != r:
        x2 = jnp.pad(x2, ((0, r_pad - r), (0, 0)))

    cost = pl.CostEstimate(
        flops=2 * r_pad * k * wo,
        transcendentals=0,
        bytes_accessed=(r_pad * k + k * wo + r_pad * wo) * itemsize,
    )

    out2 = pl.pallas_call(
        _pool_matmul_kernel,
        out_shape=jax.ShapeDtypeStruct((r_pad, wo), x.dtype),
        grid_spec=pltpu.PrefetchScalarGridSpec(
            num_scalar_prefetch=0,
            grid=(num_blocks,),
            in_specs=[
                pl.BlockSpec((tr, k), lambda i: (i, 0)),
                # Constant block index -> pooling matrix stays resident in VMEM.
                pl.BlockSpec((k, wo), lambda i: (0, 0)),
            ],
            out_specs=pl.BlockSpec((tr, wo), lambda i: (i, 0)),
        ),
        compiler_params=pltpu.CompilerParams(
            dimension_semantics=("parallel",),
            vmem_limit_bytes=vmem_limit,
            # When a crop was needed, allow the slice/reshape producer to fuse
            # into the pallas operand instead of materializing an HBM copy.
            allow_input_fusion=[True, False] if need_crop else None,
        ),
        cost_estimate=cost,
    )(x2, p)

    if r_pad != r:
        out2 = out2[:r]
    return out2.reshape(n, c, ho, wo)


def _reference(x, sz):
    kh, kw = sz
    n, c, h, w = x.shape
    ho, wo = h // kh, w // kw
    xr = x[:, :, : ho * kh, : wo * kw].reshape(n, c, ho, kh, wo, kw)
    return xr.mean(axis=(3, 5))


if __name__ == "__main__":
    key = jax.random.PRNGKey(0)
    # Small NCHW input consistent with the module's forward
    x = jax.random.normal(key, (2, 4, 16, 16), dtype=jnp.float32)
    sz = (4, 4)  # pooling window == stride (PyTorch AvgPool2d default)

    out = adaptive_avg_pool2d(x, sz)
    out = jax.block_until_ready(out)

    ref = _reference(x, sz)
    assert out.shape == (2, 4, 4, 4), out.shape
    assert jnp.allclose(out, ref, atol=1e-5, rtol=1e-5), "mismatch vs reference"
    print("KERNEL_OK")
</pallas_src>

<mosaic_0001>
module attributes {stable_mosaic.version = 11 : i64} {
  func.func @_pool_matmul_kernel(%arg0: i32, %arg1: memref<16x64xf32, #tpu.memory_space<vmem>>, %arg2: memref<64x4xf32, #tpu.memory_space<vmem>>, %arg3: memref<16x4xf32, #tpu.memory_space<vmem>>) attributes {dimension_semantics = [#tpu.dimension_semantics<parallel>], iteration_bounds = array<i64: 2>, scalar_prefetch = 0 : i64, scratch_operands = 0 : i64, tpu.core_type = #tpu.core_type<tc>, window_params = [{transform_indices = @transform_0, window_bounds = array<i64: 16, 64>}, {pipeline_mode = #tpu.pipeline_mode<synchronous>, transform_indices = @transform_1, window_bounds = array<i64: 64, 4>}, {transform_indices = @transform_2, window_bounds = array<i64: 16, 4>}]} {
    %c0 = arith.constant 0 : index
    %c0_0 = arith.constant 0 : index
    %0 = vector.load %arg1[%c0, %c0_0] : memref<16x64xf32, #tpu.memory_space<vmem>>, vector<16x64xf32>
    %c0_1 = arith.constant 0 : index
    %c0_2 = arith.constant 0 : index
    %1 = vector.load %arg2[%c0_1, %c0_2] : memref<64x4xf32, #tpu.memory_space<vmem>>, vector<64x4xf32>
    %cst = arith.constant dense<0.000000e+00> : vector<16x4xf32>
    %2 = tpu.matmul %0, %1, %cst {dimension_numbers = #tpu.dot_dimension_numbers<[1], [0], [0], [1], [0, 0, 1, 1], [], []>} : vector<16x64xf32>, vector<64x4xf32>, vector<16x4xf32> -> vector<16x4xf32>
    %c0_3 = arith.constant 0 : index
    %c0_4 = arith.constant 0 : index
    %3 = vector.load %arg3[%c0_3, %c0_4] : memref<16x4xf32, #tpu.memory_space<vmem>>, vector<16x4xf32>
    tpu.vector_store %arg3[%c0_3, %c0_4], %2 {strides = array<i32>} : memref<16x4xf32, #tpu.memory_space<vmem>>, vector<16x4xf32>,
    return
  }
  func.func @transform_0(%arg0: i32) -> (i32, i32) {
    %c0_i32 = arith.constant 0 : i32
    %c0_i32_0 = arith.constant 0 : i32
    return %arg0, %c0_i32 : i32, i32
  }
  func.func @transform_1(%arg0: i32) -> (i32, i32) {
    %c0_i32 = arith.constant 0 : i32
    %c0_i32_0 = arith.constant 0 : i32
    %c0_i32_1 = arith.constant 0 : i32
    return %c0_i32, %c0_i32_0 : i32, i32
  }
  func.func @transform_2(%arg0: i32) -> (i32, i32) {
    %c0_i32 = arith.constant 0 : i32
    %c0_i32_0 = arith.constant 0 : i32
    return %arg0, %c0_i32 : i32, i32
  }
}

</mosaic_0001>

<llo_original>
// kernel: tpu_custom_call.1
$region0: #{tpu_custom_call.1}
  #allocation0 [shape = 'u32[]', space=smem, size = 0x4, offset = 0x4, fixed_abs, tag = 'smem constant byte address 0x4 - core index']
  #allocation1 [shape = 'u32[144,128]{1,0:T(1,128)}', space=vmem, size = 0x12000, scoped, tag = 'internal scratch']
  %s0 = inlined_call_operand.vmem [shape: f32[32,64], index: 0, kind: input, shape index: {}]
  %s1 = inlined_call_operand.vmem [shape: f32[64,4], index: 1, kind: input, shape index: {}]
  %s2 = inlined_call_operand.vmem [shape: f32[32,4], index: 2, kind: output, shape index: {}]
  %s3 = sld [smem:[#allocation0]]
  $region41: #{tpu_custom_call.1} parent=0
    _
  %s5 = ssub.s32 1, %s3
  %s6 = scalar_select 0, %s5, %s3
  loop: start=0, step=1, limit=4
  $region2: #{tpu_custom_call.1} parent=0 // loop_pre_header
    _
  $region3: #{tpu_custom_call.1} parent=0 // loop_header
    %s8 = sphi 0, %s12
    %p9 = scmp.ge.s32.totalorder %s8, 4
    %s18 = sphi 0, %s20
    %s21 = sphi 0, %s18
    %s22 = sphi 0, %s21
    %s38 = sphi 0, %s22
    %s42 = sphi 0, %s42
    %s44 = sphi 0, %s42
    %s45 = sphi 0, %s44
    %s59 = sphi 0, %s45
    %s65 = sphi 0, %s67
    %s68 = sphi 0, %s65
    %s69 = sphi 0, %s68
    %s85 = sphi 0, %s69
  $region4: #{tpu_custom_call.1} parent=0 // loop_header_branch
    %11 = sbr.rel (%p9) target = $region8
  $region5: #{tpu_custom_call.1} parent=0 // loop_body
    %s13 = ssub.s32 %s8, 1
    %s14 = ssub.s32 %s8, 2
    %s15 = sadd.s32 %s8, 1
    %s16 = ssub.s32 %s8, %s15
    %p17 = scmp.eq.s32.totalorder %s16, 0
    %s19 = sadd.s32 %s18, 1
    %s20 = scalar_select %p17, %s18, %s19
    %p23 = pneg %p17
    %p24 = scmp.eq.s32.totalorder %s8, 1
    %p25 = por %p23, %p24
    %p26 = scmp.ne.s32.totalorder %s18, %s21
    %p27 = scmp.eq.s32.totalorder %s8, 0
    %p28 = por %p26, %p27
    %p29 = scmp.ne.s32.totalorder %s18, %s21
    %p30 = scmp.eq.s32.totalorder %s13, 1
    %p31 = por %p29, %p30
    %p32 = scmp.ne.s32.totalorder %s21, %s22
    %p33 = scmp.eq.s32.totalorder %s13, 0
    %p34 = por %p32, %p33
    %p35 = scmp.ne.s32.totalorder %s21, %s22
    %p36 = scmp.eq.s32.totalorder %s14, 1
    %p37 = por %p35, %p36
    %p39 = scmp.ne.s32.totalorder %s22, %s38
    %p40 = scmp.eq.s32.totalorder %s14, 0
    %p41 = por %p39, %p40
    %s43 = sadd.s32 %s42, 1
    %p46 = scmp.eq.s32.totalorder %s8, 1
    %p47 = scmp.ne.s32.totalorder %s42, %s44
    %p48 = scmp.eq.s32.totalorder %s8, 0
    %p49 = por %p47, %p48
    %p50 = scmp.ne.s32.totalorder %s42, %s44
    %p51 = scmp.eq.s32.totalorder %s13, 1
    %p52 = por %p50, %p51
    %p53 = scmp.ne.s32.totalorder %s44, %s45
    %p54 = scmp.eq.s32.totalorder %s13, 0
    %p55 = por %p53, %p54
    %p56 = scmp.ne.s32.totalorder %s44, %s45
    %p57 = scmp.eq.s32.totalorder %s14, 1
    %p58 = por %p56, %p57
    %p60 = scmp.ne.s32.totalorder %s45, %s59
    %p61 = scmp.eq.s32.totalorder %s14, 0
    %p62 = por %p60, %p61
    %s63 = ssub.s32 %s8, %s15
    %p64 = scmp.eq.s32.totalorder %s63, 0
    %s66 = sadd.s32 %s65, 1
    %s67 = scalar_select %p64, %s65, %s66
    %p70 = pneg %p64
    %p71 = scmp.eq.s32.totalorder %s8, 1
    %p72 = por %p70, %p71
    %p73 = scmp.ne.s32.totalorder %s65, %s68
    %p74 = scmp.eq.s32.totalorder %s8, 0
    %p75 = por %p73, %p74
    %p76 = scmp.ne.s32.totalorder %s65, %s68
    %p77 = scmp.eq.s32.totalorder %s13, 1
    %p78 = por %p76, %p77
    %p79 = scmp.ne.s32.totalorder %s68, %s69
    %p80 = scmp.eq.s32.totalorder %s13, 0
    %p81 = por %p79, %p80
    %p82 = scmp.ne.s32.totalorder %s68, %s69
    %p83 = scmp.eq.s32.totalorder %s14, 1
    %p84 = por %p82, %p83
    %p86 = scmp.ne.s32.totalorder %s69, %s85
    %p87 = scmp.eq.s32.totalorder %s14, 0
    %p88 = por %p86, %p87
    %p89 = scmp.le.s32.totalorder 1, %s8
    %p90 = scmp.lt.s32.totalorder %s8, 3
    %p91 = pnand %p89, %p90
    %p92 = pneg %p91
    // Predicated region
    $region9: #{tpu_custom_call.1} parent=5 // pred_check
      _
    $region10: #{tpu_custom_call.1} parent=5 // pred_check_branch
      %94 = sbr.rel (%p91) target = $region12
    $region11: #{tpu_custom_call.1} parent=5 // pred_region
      %s95 = ssub.s32 %s8, 1
      // Predicated region
      $region13: #{tpu_custom_call.1} parent=11 // pred_check
        %p96 = pneg %p55
      $region14: #{tpu_custom_call.1} parent=11 // pred_check_branch
        %98 = sbr.rel (%p96) target = $region16
      $region15: #{tpu_custom_call.1} parent=11 // pred_region
        _
      $region16: #{tpu_custom_call.1} parent=11 // pred_fallthru
        _
    $region12: #{tpu_custom_call.1} parent=5 // pred_fallthru
      _
    %p99 = scmp.lt.s32.totalorder %s8, 2
    // Predicated region
    $region17: #{tpu_custom_call.1} parent=5 // pred_check
      %p100 = pneg %p99
    $region18: #{tpu_custom_call.1} parent=5 // pred_check_branch
      %102 = sbr.rel (%p100) target = $region20
    $region19: #{tpu_custom_call.1} parent=5 // pred_region
      // Predicated region
      $region21: #{tpu_custom_call.1} parent=19 // pred_check
        %p103 = pneg %p28
      $region22: #{tpu_custom_call.1} parent=19 // pred_check_branch
        %105 = sbr.rel (%p103) target = $region24
      $region23: #{tpu_custom_call.1} parent=19 // pred_region
        %s106 = smul.u32 2, %s8
        %p107 = scmp.lt.s32.totalorder %s106, 3
        %s108 = scalar_select %p107, %s106, 3
        %s109 = smul.addr %s108, 8
        %s110 = scalar_lea.vmem %s0, %s109
        %s111 = smul.u32 2, %s8
      $region24: #{tpu_custom_call.1} parent=19 // pred_fallthru
        _
    $region20: #{tpu_custom_call.1} parent=5 // pred_fallthru
      _
    %p112 = scmp.le.s32.totalorder 1, %s8
    %p113 = scmp.lt.s32.totalorder %s8, 3
    %p114 = pnand %p112, %p113
    %p115 = pneg %p114
    // Predicated region
    $region25: #{tpu_custom_call.1} parent=5 // pred_check
      _
    $region26: #{tpu_custom_call.1} parent=5 // pred_check_branch
      %117 = sbr.rel (%p114) target = $region28
    $region27: #{tpu_custom_call.1} parent=5 // pred_region
      %s118 = ssub.s32 %s8, 1
      %s119 = smul.u32 2, %s13
      %p120 = scmp.lt.s32.totalorder %s119, 3
      %s121 = scalar_select %p120, %s119, 3
      %s122 = smul.addr %s121, 8
      %s123 = scalar_lea.vmem %s0, %s122
      %p124 = pneg %p34
      %p125 = pneg %p31
      %p126 = pneg %p55
      %p127 = pneg %p52
      %p128 = pneg %p81
      %p129 = pneg %p78
      %s130 = smul.u32 2, %s13
      %p131 = scmp.lt.s32.totalorder %s130, 3
      %s132 = scalar_select %p131, %s130, 3
      %s133 = smul.addr %s132, 8
      %s134 = scalar_lea.vmem %s2, %s133
      %s135 = smul.u32 2, %s13
      %p136 = scmp.lt.s32.totalorder %s135, 3
      %s137 = scalar_select %p136, %s135, 3
      %s138 = smul.addr %s137, 8
      %s139 = scalar_lea.vmem %s0, %s138
      %s140 = smul.u32 2, %s13
      %s141 = smul.u32 2, %s13
      %p142 = scmp.lt.s32.totalorder %s141, 3
      %s143 = scalar_select %p142, %s141, 3
      %s144 = smul.addr %s143, 8
      %s145 = scalar_lea.vmem %s2, %s144
      %s146 = smul.u32 2, %s13
      %v147 = vld [vmem:[%s139] sm:$0xff]
      %v148 = vld [vmem:[%s139 + $0x8] sm:$0xff]
      %v149 = vld [vmem:[%s1] sm:$0xff]
      %v150 = vld [vmem:[%s1 + $0x8] sm:$0xff]
      %v151 = vld [vmem:[%s1 + $0x10] sm:$0xff]
      %v152 = vld [vmem:[%s1 + $0x18] sm:$0xff]
      %v153 = vld [vmem:[%s1 + $0x20] sm:$0xff]
      %v154 = vld [vmem:[%s1 + $0x28] sm:$0xff]
      %v155 = vld [vmem:[%s1 + $0x30] sm:$0xff]
      %v156 = vld [vmem:[%s1 + $0x38] sm:$0xff]
      %vm157 = vcmask 523264
      %v159 = vsel %vm157, %v147, 0
      %v162 = vsel %vm157, %v148, 0
      %164 = vmatprep.subr.mxu0 0.0
      %165 = vmatpush1.msra.mxu0 %v149
      %166 = vmatprep.subr.mxu0 0.0
      %167 = vmatpush1.msra.mxu0 %v150
      %168 = vmatprep.subr.mxu0 0.0
      %169 = vmatpush1.msra.mxu0 %v151
      %170 = vmatprep.subr.mxu0 0.0
      %171 = vmatpush1.msra.mxu0 %v152
      %172 = vmatprep.subr.mxu0 0.0
      %173 = vmatpush1.msra.mxu0 %v153
      %174 = vmatprep.subr.mxu0 0.0
      %175 = vmatpush1.msra.mxu0 %v154
      %176 = vmatprep.subr.mxu0 0.0
      %177 = vmatpush1.msra.mxu0 %v155
      %178 = vmatprep.subr.mxu0 0.0
      %179 = vmatpush1.msra.mxu0 %v156
      %180 = vmatprep.subr.mxu0 0.0
      %181 = vmatpush1.msra.mxu0 0.0
      %182 = vmatprep.subr.mxu0 0.0
      %183 = vmatpush1.msra.mxu0 0.0
      %184 = vmatprep.subr.mxu0 0.0
      %185 = vmatpush1.msra.mxu0 0.0
      %186 = vmatprep.subr.mxu0 0.0
      %187 = vmatpush1.msra.mxu0 0.0
      %188 = vmatprep.subr.mxu0 0.0
      %189 = vmatpush1.msra.mxu0 0.0
      %190 = vmatprep.subr.mxu0 0.0
      %191 = vmatpush1.msra.mxu0 0.0
      %192 = vmatprep.subr.mxu0 0.0
      %193 = vmatpush1.msra.mxu0 0.0
      %194 = vmatprep.subr.mxu0 0.0
      %195 = vmatpush1.msra.mxu0 0.0
      %196 = vmatprep.subr.mxu0 0.0
      %197 = vmatpush1.msra.mxu0 0.0
      %198 = vmatprep.subr.mxu0 0.0
      %199 = vmatpush1.msra.mxu0 0.0
      %200 = vmatprep.subr.mxu0 0.0
      %201 = vmatpush1.msra.mxu0 0.0
      %202 = vmatprep.subr.mxu0 0.0
      %203 = vmatpush1.msra.mxu0 0.0
      %204 = vmatprep.subr.mxu0 0.0
      %205 = vmatpush1.msra.mxu0 0.0
      %206 = vmatprep.subr.mxu0 0.0
      %207 = vmatpush1.msra.mxu0 0.0
      %208 = vmatprep.subr.mxu0 0.0
      %209 = vmatpush1.msra.mxu0 0.0
      %210 = vmatprep.subr.mxu0 0.0
      %211 = vmatpush1.msra.mxu0 0.0
      %212 = vmatprep.subr.mxu0 0.0
      %213 = vmatpush1.msra.mxu0 0.0
      %214 = vmatprep.subr.mxu0 0.0
      %215 = vmatpush1.msra.mxu0 0.0
      %216 = vmatprep.subr.mxu0 0.0
      %217 = vmatpush1.msra.mxu0 0.0
      %218 = vmatprep.subr.mxu0 0.0
      %219 = vmatpush1.msra.mxu0 0.0
      %220 = vmatprep.subr.mxu0 0.0
      %221 = vmatpush1.msra.mxu0 0.0
      %222 = vmatprep.subr.mxu0 0.0
      %223 = vmatpush1.msra.mxu0 0.0
      %224 = vmatprep.subr.mxu0 0.0
      %225 = vmatpush1.msra.mxu0 0.0
      %226 = vmatprep.subr.mxu0 0.0
      %227 = vmatpush1.msra.mxu0 0.0
      %228 = vmatprep.mubr.f32.mxu0 0.0
      %229 = vmatmul.mubr.f32.gmra.mrb[0].mxu0 %v159
      %v230 = vpop.f32.mrb[0].mxu0
      %v231 = vadd.f32 0.0, %v230
      %v232 = vpop.f32.mrb[0].mxu0
      %233 = vmatprep.mubr.f32.mxu0 0.0
      %234 = vmatmul.mubr.f32.gmra.mrb[0].mxu0 %v162
      %v235 = vpop.f32.mrb[0].mxu0
      %v236 = vadd.f32 0.0, %v235
      %v237 = vpop.f32.mrb[0].mxu0
      %238 = vdwg.mxu0
      %vm239 = vcmask 31744
      %240 = vst.msk [vmem:[%s145] sm:$0xff] %vm239, %v231
      %241 = vst.msk [vmem:[%s145 + $0x8] sm:$0xff] %vm239, %v236
      %s242 = smul.u32 2, %s13
      %p243 = scmp.lt.s32.totalorder %s242, 3
      %s244 = scalar_select %p243, %s242, 3
      %s245 = smul.addr %s244, 8
      %s246 = scalar_lea.vmem %s2, %s245
      // Predicated region
      $region29: #{tpu_custom_call.1} parent=27 // pred_check
        %p247 = pneg %p78
      $region30: #{tpu_custom_call.1} parent=27 // pred_check_branch
        %249 = sbr.rel (%p247) target = $region32
      $region31: #{tpu_custom_call.1} parent=27 // pred_region
        %s250 = smul.u32 2, %s13
      $region32: #{tpu_custom_call.1} parent=27 // pred_fallthru
        _
    $region28: #{tpu_custom_call.1} parent=5 // pred_fallthru
      _
    %p251 = scmp.le.s32.totalorder 2, %s8
    // Predicated region
    $region33: #{tpu_custom_call.1} parent=5 // pred_check
      %p252 = pneg %p251
    $region34: #{tpu_custom_call.1} parent=5 // pred_check_branch
      %254 = sbr.rel (%p252) target = $region36
    $region35: #{tpu_custom_call.1} parent=5 // pred_region
      %s255 = ssub.s32 %s8, 2
      // Predicated region
      $region37: #{tpu_custom_call.1} parent=35 // pred_check
        %p256 = pneg %p84
      $region38: #{tpu_custom_call.1} parent=35 // pred_check_branch
        %258 = sbr.rel (%p256) target = $region40
      $region39: #{tpu_custom_call.1} parent=35 // pred_region
        %s259 = smul.u32 2, %s14
        %p260 = scmp.lt.s32.totalorder %s259, 3
        %s261 = scalar_select %p260, %s259, 3
        %s262 = smul.addr %s261, 8
        %s263 = scalar_lea.vmem %s2, %s262
      $region40: #{tpu_custom_call.1} parent=35 // pred_fallthru
        _
    $region36: #{tpu_custom_call.1} parent=5 // pred_fallthru
      _
  $region6: #{tpu_custom_call.1} parent=0 // loop_footer
    %s12 = sadd.s32 1, %s8
  $region7: #{tpu_custom_call.1} parent=0 // loop_footer_branch
    %7 = sbr.rel target = $region3
  $region8: #{tpu_custom_call.1} parent=0 // loop_exit
    _

</llo_original>
